<compile_context>
chip_gen: v6e
topology: v6e:2x2x1
jax: 0.10.0
libtpu: 0.0.40
codegen_flags: <defaults>
</compile_context>

<pallas_src>
import functools
from typing import NamedTuple

import jax
import jax.numpy as jnp
from jax.experimental import pallas as pl
from jax.experimental.pallas import tpu as pltpu


# ----------------------------------------------------------------------------
# small helpers
# ----------------------------------------------------------------------------
def _round_up(a: int, b: int) -> int:
    return -(-a // b) * b


def _cdiv(a: int, b: int) -> int:
    return -(-a // b)


def _vmem_capacity_bytes() -> int:
    """Physical VMEM per TensorCore (v5e/v6e: 128 MiB, v7x: 64 MiB)."""
    try:
        cap = int(pltpu.get_tpu_info().vmem_capacity_bytes)
        if cap > 0:
            return cap
    except Exception:
        pass
    return 64 << 20  # conservative fallback (v7x per-TC)


def _dim_options(dim_p: int, prefer: int):
    """Tile-size candidates that exactly divide the padded dim (desc order)."""
    opts = [dim_p]
    for c in (prefer, 1024, 512, 256, 128):
        c = min(dim_p, _round_up(c, 128))
        if dim_p % c == 0 and c not in opts:
            opts.append(c)
    return opts


def _choose_tiles(M, Kp, Np, in_sz, out_sz, out_is_f32, budget,
                  tile_m, tile_n, tile_k):
    """Pick (tm, tn, tk) fitting the VMEM budget; prefer resident weight."""

    def balanced_tm(cap):
        cap = max(8, min(_round_up(cap, 8), _round_up(M, 8)))
        nblk = _cdiv(M, cap)
        return _round_up(_cdiv(M, nblk), 8)

    def footprint(tm, tn, tk):
        use_acc = (Kp // tk > 1) and (not out_is_f32)
        return (2 * tm * tk * in_sz        # x tiles, double-buffered
                + 2 * tk * tn * in_sz      # w tiles, double-buffered
                + 2 * tn * 4               # bias tile
                + 2 * tm * tn * out_sz     # output tile, double-buffered
                + (tm * tn * 4 if use_acc else 0))

    tm_opts = []
    for cap in (tile_m, 768, 512, 384, 256, 192, 128, 64, 32, 16, 8):
        tm = balanced_tm(cap)
        if tm not in tm_opts:
            tm_opts.append(tm)

    # Phase 1: whole padded weight resident (tk=Kp, tn=Np) -> grid (Mp/tm,1,1),
    # weight DMA'd from HBM exactly once across all M tiles.
    tm_floor = min(256, _round_up(M, 8))
    for tm in tm_opts:
        if tm < tm_floor:
            continue
        if footprint(tm, Np, Kp) <= budget:
            return tm, Np, Kp

    # Phase 2: tiled weight; keep tm/tn large, shrink tk (non-output dim) first.
    tn_opts = _dim_options(Np, tile_n)
    tk_opts = _dim_options(Kp, tile_k)
    for tm in tm_opts:
        for tn in tn_opts:
            for tk in tk_opts:
                if footprint(tm, tn, tk) <= budget:
                    return tm, tn, tk
    return 8, 128, 128  # minimal fallback


# ----------------------------------------------------------------------------
# kernels
# ----------------------------------------------------------------------------
def _aeblock_kernel_acc_out(x_ref, w_ref, b_ref, o_ref, *, negative_slope):
    """f32 output: accumulate directly in the resident output block."""
    k = pl.program_id(2)

    @pl.when(k == 0)
    def _():
        o_ref[...] = jnp.zeros_like(o_ref)

    o_ref[...] += jnp.dot(x_ref[...], w_ref[...],
                          preferred_element_type=jnp.float32)

    @pl.when(k == pl.num_programs(2) - 1)
    def _():
        y = o_ref[...] + b_ref[...]                       # bias broadcast (f32)
        o_ref[...] = jnp.where(y >= 0, y, negative_slope * y)   # LeakyReLU


def _aeblock_kernel_scratch(x_ref, w_ref, b_ref, o_ref, acc_ref, *,
                            negative_slope):
    """Non-f32 output: f32 VMEM accumulator, cast on finalize."""
    k = pl.program_id(2)

    @pl.when(k == 0)
    def _():
        acc_ref[...] = jnp.zeros_like(acc_ref)

    acc_ref[...] += jnp.dot(x_ref[...], w_ref[...],
                            preferred_element_type=jnp.float32)

    @pl.when(k == pl.num_programs(2) - 1)
    def _():
        y = acc_ref[...] + b_ref[...]
        o_ref[...] = jnp.where(y >= 0, y, negative_slope * y).astype(o_ref.dtype)


# ----------------------------------------------------------------------------
# parameter preparation (hoisted out of the per-call hot path)
# ----------------------------------------------------------------------------
class AEBlockParams(NamedTuple):
    w_p: jax.Array          # (Kp, Np) padded, transposed weight
    b_p: jax.Array          # (1, Np)  padded bias, f32
    out_features: int
    in_features: int


def prepare_aeblock_params(weight, bias, *, use_bf16_operands: bool = True):
    """weight: (N, K) torch nn.Linear convention; bias: (N,). Call once."""
    N, K = weight.shape
    Kp = _round_up(K, 128)
    Np = _round_up(N, 128)
    w_p = jnp.pad(weight.T, ((0, Kp - K), (0, Np - N)))           # (Kp, Np)
    b_p = jnp.pad(bias, (0, Np - N)).reshape(1, Np).astype(jnp.float32)
    if use_bf16_operands:
        w_p = w_p.astype(jnp.bfloat16)
    return AEBlockParams(w_p=w_p, b_p=b_p, out_features=N, in_features=K)


# ----------------------------------------------------------------------------
# forward
# ----------------------------------------------------------------------------
def aeblock_apply(x, w_p, b_p, out_features, negative_slope: float = 0.2, *,
                  tile_m: int = 512, tile_n: int = 1024, tile_k: int = 1024):
    """x: (M, K); w_p: (Kp, Np) prepared weight; b_p: (1, Np) f32 bias."""
    M, K = x.shape
    Kp, Np = w_p.shape
    N = out_features
    assert Kp >= K and Kp % 128 == 0 and Np % 128 == 0

    out_dtype = x.dtype
    in_dtype = w_p.dtype
    in_sz = jnp.dtype(in_dtype).itemsize
    out_sz = jnp.dtype(out_dtype).itemsize
    out_is_f32 = out_dtype == jnp.float32

    # Generation-aware VMEM budget (v5e/v6e ~96 MiB, v7x ~48 MiB usable).
    vmem_cap = _vmem_capacity_bytes()
    budget = min(vmem_cap * 3 // 4, vmem_cap - (12 << 20))

    tm, tn, tk = _choose_tiles(M, Kp, Np, in_sz, out_sz, out_is_f32, budget,
                               tile_m, tile_n, tile_k)
    Mp = _round_up(M, tm)

    # Per-call glue: only x is padded / cast (weight prep is hoisted).
    x_p = jnp.pad(x, ((0, Mp - M), (0, Kp - K))).astype(in_dtype)

    grid = (Mp // tm, Np // tn, Kp // tk)
    gm, gn, gk = grid

    if out_is_f32:
        kernel = functools.partial(_aeblock_kernel_acc_out,
                                   negative_slope=negative_slope)
        scratch_shapes = []
        acc_bytes = 0
    else:
        kernel = functools.partial(_aeblock_kernel_scratch,
                                   negative_slope=negative_slope)
        scratch_shapes = [pltpu.VMEM((tm, tn), jnp.float32)]
        acc_bytes = tm * tn * 4

    footprint = (2 * tm * tk * in_sz + 2 * tk * tn * in_sz + 2 * tn * 4
                 + 2 * tm * tn * out_sz + acc_bytes)
    vmem_limit = max(32 << 20, min(footprint + (8 << 20), budget))

    # Advisory cost estimate with real itemsizes / re-stream counts.
    x_fetches = gn if gk > 1 else 1
    w_fetches = 1 if (gn == 1 and gk == 1) else gm
    bytes_accessed = (x_fetches * Mp * Kp * in_sz
                      + w_fetches * Kp * Np * in_sz
                      + Mp * Np * out_sz + Np * 4)

    out_p = pl.pallas_call(
        kernel,
        out_shape=jax.ShapeDtypeStruct((Mp, Np), out_dtype),
        grid_spec=pltpu.PrefetchScalarGridSpec(
            num_scalar_prefetch=0,
            grid=grid,
            in_specs=[
                pl.BlockSpec((tm, tk), lambda i, j, k: (i, k)),   # x tile
                pl.BlockSpec((tk, tn), lambda i, j, k: (k, j)),   # weight tile
                pl.BlockSpec((1, tn), lambda i, j, k: (0, j)),    # bias tile
            ],
            out_specs=pl.BlockSpec((tm, tn), lambda i, j, k: (i, j)),
            scratch_shapes=scratch_shapes,
        ),
        compiler_params=pltpu.CompilerParams(
            dimension_semantics=("parallel", "parallel", "arbitrary"),
            vmem_limit_bytes=int(vmem_limit),
        ),
        cost_estimate=pl.CostEstimate(
            flops=2 * M * K * N,
            transcendentals=0,
            bytes_accessed=int(bytes_accessed),
        ),
    )(x_p, w_p, b_p)

    return out_p[:M, :N]


def aeblock_forward(x, weight, bias, negative_slope: float = 0.2, *,
                    use_bf16_operands: bool = True, **tile_kwargs):
    """Convenience one-shot path (prefer prepare_aeblock_params + aeblock_apply
    when the same weights are reused across many calls)."""
    p = prepare_aeblock_params(weight, bias, use_bf16_operands=use_bf16_operands)
    return aeblock_apply(x, p.w_p, p.b_p, p.out_features, negative_slope,
                         **tile_kwargs)


def _reference(x, weight, bias, negative_slope):
    y = x @ weight.T + bias
    return jnp.where(y >= 0, y, negative_slope * y)


# ----------------------------------------------------------------------------
# self-test
# ----------------------------------------------------------------------------
if __name__ == "__main__":
    key = jax.random.PRNGKey(0)
    ns = 0.2
    k_x, k_w, k_b, k_x2, k_w2, k_b2 = jax.random.split(key, 6)

    # --- case 1: the module's toy shape, strict f32 operand path -------------
    batch, in_channel, out_channel = 8, 32, 16
    bound = 1.0 / (in_channel ** 0.5)
    weight = jax.random.uniform(k_w, (out_channel, in_channel),
                                minval=-bound, maxval=bound, dtype=jnp.float32)
    bias = jax.random.uniform(k_b, (out_channel,),
                              minval=-bound, maxval=bound, dtype=jnp.float32)
    x = jax.random.normal(k_x, (batch, in_channel), dtype=jnp.float32)
    ref = _reference(x, weight, bias, ns)

    params_f32 = prepare_aeblock_params(weight, bias, use_bf16_operands=False)
    out = jax.block_until_ready(
        aeblock_apply(x, params_f32.w_p, params_f32.b_p,
                      params_f32.out_features, ns))
    assert out.shape == (batch, out_channel)
    assert jnp.allclose(out, ref, atol=1e-5, rtol=1e-5), "mismatch (f32 path)"

    # --- case 1b: default bf16-operand path (f32 accumulation) ---------------
    params_bf16 = prepare_aeblock_params(weight, bias)  # bf16 operands default
    out_bf = jax.block_until_ready(
        aeblock_apply(x, params_bf16.w_p, params_bf16.b_p,
                      params_bf16.out_features, ns))
    assert out_bf.shape == (batch, out_channel)
    assert jnp.allclose(out_bf, ref, atol=5e-2, rtol=5e-2), "mismatch (bf16 path)"

    # --- case 2: ragged shapes (exercises padding + balanced-M tiling) -------
    M2, K2, N2 = 300, 200, 150
    bound2 = 1.0 / (K2 ** 0.5)
    w2 = jax.random.uniform(k_w2, (N2, K2), minval=-bound2, maxval=bound2,
                            dtype=jnp.float32)
    b2 = jax.random.uniform(k_b2, (N2,), minval=-bound2, maxval=bound2,
                            dtype=jnp.float32)
    x2 = jax.random.normal(k_x2, (M2, K2), dtype=jnp.float32)

    out2 = jax.block_until_ready(
        aeblock_forward(x2, w2, b2, ns, use_bf16_operands=False))
    ref2 = _reference(x2, w2, b2, ns)
    assert out2.shape == (M2, N2)
    assert jnp.allclose(out2, ref2, atol=1e-4, rtol=1e-4), "mismatch (case 2)"

    print("KERNEL_OK")
</pallas_src>

<mosaic_0001>
module attributes {stable_mosaic.version = 11 : i64} {
  func.func @_aeblock_kernel_acc_out(%arg0: i32, %arg1: i32, %arg2: i32, %arg3: memref<8x128xf32, #tpu.memory_space<vmem>>, %arg4: memref<128x128xf32, #tpu.memory_space<vmem>>, %arg5: memref<1x128xf32, #tpu.memory_space<vmem>>, %arg6: memref<8x128xf32, #tpu.memory_space<vmem>>) attributes {dimension_semantics = [#tpu.dimension_semantics<parallel>, #tpu.dimension_semantics<parallel>, #tpu.dimension_semantics<arbitrary>], iteration_bounds = array<i64: 1, 1, 1>, scalar_prefetch = 0 : i64, scratch_operands = 0 : i64, tpu.core_type = #tpu.core_type<tc>, window_params = [{transform_indices = @transform_0, window_bounds = array<i64: 8, 128>}, {transform_indices = @transform_1, window_bounds = array<i64: 128, 128>}, {transform_indices = @transform_2, window_bounds = array<i64: 1, 128>}, {transform_indices = @transform_3, window_bounds = array<i64: 8, 128>}]} {
    %c0_i32 = arith.constant 0 : i32
    %0 = arith.cmpi eq, %arg2, %c0_i32 : i32
    %1 = arith.extui %0 : i1 to i32
    %c0_i32_0 = arith.constant 0 : i32
    %2 = arith.cmpi ne, %1, %c0_i32_0 : i32
    scf.if %2 {
      %cst_10 = arith.constant 0.000000e+00 : f32
      %12 = vector.broadcast %cst_10 : f32 to vector<8x128xf32>
      %c0_11 = arith.constant 0 : index
      %c0_12 = arith.constant 0 : index
      %13 = vector.load %arg6[%c0_11, %c0_12] : memref<8x128xf32, #tpu.memory_space<vmem>>, vector<8x128xf32>
      tpu.vector_store %arg6[%c0_11, %c0_12], %12 {strides = array<i32>} : memref<8x128xf32, #tpu.memory_space<vmem>>, vector<8x128xf32>,
    } else {
    }
    %c0 = arith.constant 0 : index
    %c0_1 = arith.constant 0 : index
    %3 = vector.load %arg6[%c0, %c0_1] : memref<8x128xf32, #tpu.memory_space<vmem>>, vector<8x128xf32>
    %c0_2 = arith.constant 0 : index
    %c0_3 = arith.constant 0 : index
    %4 = vector.load %arg3[%c0_2, %c0_3] : memref<8x128xf32, #tpu.memory_space<vmem>>, vector<8x128xf32>
    %c0_4 = arith.constant 0 : index
    %c0_5 = arith.constant 0 : index
    %5 = vector.load %arg4[%c0_4, %c0_5] : memref<128x128xf32, #tpu.memory_space<vmem>>, vector<128x128xf32>
    %cst = arith.constant dense<0.000000e+00> : vector<8x128xf32>
    %6 = tpu.matmul %4, %5, %cst {dimension_numbers = #tpu.dot_dimension_numbers<[1], [0], [0], [1], [0, 0, 1, 1], [], []>} : vector<8x128xf32>, vector<128x128xf32>, vector<8x128xf32> -> vector<8x128xf32>
    %7 = arith.addf %3, %6 : vector<8x128xf32>
    %c0_6 = arith.constant 0 : index
    %c0_7 = arith.constant 0 : index
    %8 = vector.load %arg6[%c0_6, %c0_7] : memref<8x128xf32, #tpu.memory_space<vmem>>, vector<8x128xf32>
    tpu.vector_store %arg6[%c0_6, %c0_7], %7 {strides = array<i32>} : memref<8x128xf32, #tpu.memory_space<vmem>>, vector<8x128xf32>,
    %c0_i32_8 = arith.constant 0 : i32
    %9 = arith.cmpi eq, %arg2, %c0_i32_8 : i32
    %10 = arith.extui %9 : i1 to i32
    %c0_i32_9 = arith.constant 0 : i32
    %11 = arith.cmpi ne, %10, %c0_i32_9 : i32
    scf.if %11 {
      %c0_10 = arith.constant 0 : index
      %c0_11 = arith.constant 0 : index
      %12 = vector.load %arg6[%c0_10, %c0_11] : memref<8x128xf32, #tpu.memory_space<vmem>>, vector<8x128xf32>
      %c0_12 = arith.constant 0 : index
      %c0_13 = arith.constant 0 : index
      %13 = vector.load %arg5[%c0_12, %c0_13] : memref<1x128xf32, #tpu.memory_space<vmem>>, vector<1x128xf32>
      %14 = vector.broadcast %13 : vector<1x128xf32> to vector<8x128xf32>
      %15 = arith.addf %12, %14 : vector<8x128xf32>
      %cst_14 = arith.constant 0.000000e+00 : f32
      %16 = vector.broadcast %cst_14 : f32 to vector<8x128xf32>
      %17 = arith.cmpf oge, %15, %16 : vector<8x128xf32>
      %cst_15 = arith.constant 2.000000e-01 : f32
      %18 = vector.broadcast %cst_15 : f32 to vector<8x128xf32>
      %19 = arith.mulf %18, %15 : vector<8x128xf32>
      %20 = arith.select %17, %15, %19 : vector<8x128xi1>, vector<8x128xf32>
      %c0_16 = arith.constant 0 : index
      %c0_17 = arith.constant 0 : index
      %21 = vector.load %arg6[%c0_16, %c0_17] : memref<8x128xf32, #tpu.memory_space<vmem>>, vector<8x128xf32>
      tpu.vector_store %arg6[%c0_16, %c0_17], %20 {strides = array<i32>} : memref<8x128xf32, #tpu.memory_space<vmem>>, vector<8x128xf32>,
    } else {
    }
    return
  }
  func.func @transform_0(%arg0: i32, %arg1: i32, %arg2: i32) -> (i32, i32) {
    %c0_i32 = arith.constant 0 : i32
    return %arg0, %arg2 : i32, i32
  }
  func.func @transform_1(%arg0: i32, %arg1: i32, %arg2: i32) -> (i32, i32) {
    %c0_i32 = arith.constant 0 : i32
    return %arg2, %arg1 : i32, i32
  }
  func.func @transform_2(%arg0: i32, %arg1: i32, %arg2: i32) -> (i32, i32) {
    %c0_i32 = arith.constant 0 : i32
    %c0_i32_0 = arith.constant 0 : i32
    return %c0_i32, %arg1 : i32, i32
  }
  func.func @transform_3(%arg0: i32, %arg1: i32, %arg2: i32) -> (i32, i32) {
    %c0_i32 = arith.constant 0 : i32
    return %arg0, %arg1 : i32, i32
  }
}

</mosaic_0001>

<llo_original>
// kernel: tpu_custom_call.1
$region0: #{tpu_custom_call.1}
  #allocation0 [shape = 'u32[]', space=smem, size = 0x4, offset = 0x4, fixed_abs, tag = 'smem constant byte address 0x4 - core index']
  #allocation1 [shape = 'u32[144,128]{1,0:T(1,128)}', space=vmem, size = 0x12000, scoped, tag = 'internal scratch']
  %s0 = inlined_call_operand.hbm [shape: f32[8,128], index: 0, kind: input, shape index: {}]
  %s1 = inlined_call_operand.hbm [shape: f32[128,128], index: 1, kind: input, shape index: {}]
  %s2 = inlined_call_operand.vmem [shape: f32[1,128], index: 2, kind: input, shape index: {}]
  %s3 = inlined_call_operand.hbm [shape: f32[8,128], index: 3, kind: output, shape index: {}]
  %s4 = sld [smem:[#allocation0]]
  $region38: #{tpu_custom_call.1} parent=0
    _
  %s6 = ssub.s32 1, %s4
  %s7 = scalar_select 0, %s6, %s4
  $region1: #{tpu_custom_call.1} parent=0
    #allocation2 [shape = 'u8[4096]{0}', space=vmem, size = 0x1000, scoped, tag = 'input window, operand 0, single buffered']
    #allocation3 [shape = 's32[1]{0}', space=sflag, size = 0x4, scoped, tag = 'scoped memory for tpu_custom_call.1']
    #allocation4 [shape = 's32[1]{0}', space=sflag, size = 0x4, scoped, tag = 'scoped memory for tpu_custom_call.1']
    #allocation5 [shape = 'u8[65536]{0}', space=vmem, size = 0x10000, scoped, tag = 'input window, operand 1, single buffered']
    #allocation6 [shape = 's32[1]{0}', space=sflag, size = 0x4, scoped, tag = 'scoped memory for tpu_custom_call.1']
    #allocation7 [shape = 'u8[4096]{0}', space=vmem, size = 0x1000, scoped, tag = 'output window, operand 0, single buffered']
    %8 = vsyncpa [#allocation3], 0
    %9 = vsyncpa [#allocation6], 0
    %10 = vsyncpa [#allocation4], 0
    // Predicated region
    $region2: #{tpu_custom_call.1} parent=1 // pred_check
      _
    $region3: #{tpu_custom_call.1} parent=1 // pred_check_branch
      %12 = sbr.rel (0) target = $region5
    $region4: #{tpu_custom_call.1} parent=1 // pred_region
      %s14 = ssub.s32 128, 128
      %15 = vsyncadd [#allocation3], %s14
      %s17 = sshll.u32 [#allocation2], 4
      %s18 = int_to_ptr.vmem [resolvable:$true] %s17
      %20 = dma.hbm_to_vmem [thread:$0]  %s0, 128, %s18, [#allocation3]
    $region5: #{tpu_custom_call.1} parent=1 // pred_fallthru
      _
    // Predicated region
    $region6: #{tpu_custom_call.1} parent=1 // pred_check
      _
    $region7: #{tpu_custom_call.1} parent=1 // pred_check_branch
      %22 = sbr.rel (0) target = $region9
    $region8: #{tpu_custom_call.1} parent=1 // pred_region
      %s24 = ssub.s32 2048, 2048
      %25 = vsyncadd [#allocation6], %s24
      %s26 = sshll.u32 [#allocation5], 4
      %s27 = int_to_ptr.vmem [resolvable:$true] %s26
      %32 = dma.hbm_to_vmem [thread:$0]  %s1, 2048, %s27, [#allocation6], 128, 128, 8
    $region9: #{tpu_custom_call.1} parent=1 // pred_fallthru
      _
    // Predicated region
    $region10: #{tpu_custom_call.1} parent=1 // pred_check
      _
    $region11: #{tpu_custom_call.1} parent=1 // pred_check_branch
      %34 = sbr.rel (0) target = $region13
    $region12: #{tpu_custom_call.1} parent=1 // pred_region
      _
    $region13: #{tpu_custom_call.1} parent=1 // pred_fallthru
      _
    // Predicated region
    $region14: #{tpu_custom_call.1} parent=1 // pred_check
      _
    $region15: #{tpu_custom_call.1} parent=1 // pred_check_branch
      %36 = sbr.rel (0) target = $region17
    $region16: #{tpu_custom_call.1} parent=1 // pred_region
      %37 = dma.done [#allocation3], 128
    $region17: #{tpu_custom_call.1} parent=1 // pred_fallthru
      _
    // Predicated region
    $region18: #{tpu_custom_call.1} parent=1 // pred_check
      _
    $region19: #{tpu_custom_call.1} parent=1 // pred_check_branch
      %39 = sbr.rel (0) target = $region21
    $region20: #{tpu_custom_call.1} parent=1 // pred_region
      %40 = dma.done [#allocation6], 2048
    $region21: #{tpu_custom_call.1} parent=1 // pred_fallthru
      _
    %p41 = scmp.eq.s32.totalorder 0, 0
    // Predicated region
    $region22: #{tpu_custom_call.1} parent=1 // pred_check
      %p42 = pneg %p41
    $region23: #{tpu_custom_call.1} parent=1 // pred_check_branch
      %44 = sbr.rel (%p42) target = $region25
    $region24: #{tpu_custom_call.1} parent=1 // pred_region
      %45 = vst [vmem:[#allocation7] sm:$0xff] 0.0
    $region25: #{tpu_custom_call.1} parent=1 // pred_fallthru
      _
    %v46 = vld [vmem:[#allocation7] sm:$0xff]
    %v47 = vld [vmem:[#allocation2] sm:$0xff]
    %v48 = vld [vmem:[#allocation5] sm:$0xff]
    %v49 = vld [vmem:[#allocation5 + $0x8] sm:$0xff]
    %v50 = vld [vmem:[#allocation5 + $0x10] sm:$0xff]
    %v51 = vld [vmem:[#allocation5 + $0x18] sm:$0xff]
    %v52 = vld [vmem:[#allocation5 + $0x20] sm:$0xff]
    %v53 = vld [vmem:[#allocation5 + $0x28] sm:$0xff]
    %v54 = vld [vmem:[#allocation5 + $0x30] sm:$0xff]
    %v55 = vld [vmem:[#allocation5 + $0x38] sm:$0xff]
    %v56 = vld [vmem:[#allocation5 + $0x40] sm:$0xff]
    %v57 = vld [vmem:[#allocation5 + $0x48] sm:$0xff]
    %v58 = vld [vmem:[#allocation5 + $0x50] sm:$0xff]
    %v59 = vld [vmem:[#allocation5 + $0x58] sm:$0xff]
    %v60 = vld [vmem:[#allocation5 + $0x60] sm:$0xff]
    %v61 = vld [vmem:[#allocation5 + $0x68] sm:$0xff]
    %v62 = vld [vmem:[#allocation5 + $0x70] sm:$0xff]
    %v63 = vld [vmem:[#allocation5 + $0x78] sm:$0xff]
    %64 = vmatprep.subr.mxu0 0.0
    %65 = vmatpush1.msra.mxu0 %v63
    %66 = vmatprep.subr.mxu0 0.0
    %67 = vmatpush1.msra.mxu0 %v62
    %68 = vmatprep.subr.mxu0 0.0
    %69 = vmatpush1.msra.mxu0 %v61
    %70 = vmatprep.subr.mxu0 0.0
    %71 = vmatpush1.msra.mxu0 %v60
    %72 = vmatprep.subr.mxu0 0.0
    %73 = vmatpush1.msra.mxu0 %v59
    %74 = vmatprep.subr.mxu0 0.0
    %75 = vmatpush1.msra.mxu0 %v58
    %76 = vmatprep.subr.mxu0 0.0
    %77 = vmatpush1.msra.mxu0 %v57
    %78 = vmatprep.subr.mxu0 0.0
    %79 = vmatpush1.msra.mxu0 %v56
    %80 = vmatprep.subr.mxu0 0.0
    %81 = vmatpush1.msra.mxu0 %v55
    %82 = vmatprep.subr.mxu0 0.0
    %83 = vmatpush1.msra.mxu0 %v54
    %84 = vmatprep.subr.mxu0 0.0
    %85 = vmatpush1.msra.mxu0 %v53
    %86 = vmatprep.subr.mxu0 0.0
    %87 = vmatpush1.msra.mxu0 %v52
    %88 = vmatprep.subr.mxu0 0.0
    %89 = vmatpush1.msra.mxu0 %v51
    %90 = vmatprep.subr.mxu0 0.0
    %91 = vmatpush1.msra.mxu0 %v50
    %92 = vmatprep.subr.mxu0 0.0
    %93 = vmatpush1.msra.mxu0 %v49
    %94 = vmatprep.subr.mxu0 0.0
    %95 = vmatpush1.msra.mxu0 %v48
    %96 = vmatprep.subr.mxu0 0.0
    %97 = vmatpush2.msra.mxu0 0.0
    %98 = vmatprep.subr.mxu0 0.0
    %99 = vmatpush2.msra.mxu0 0.0
    %100 = vmatprep.subr.mxu0 0.0
    %101 = vmatpush2.msra.mxu0 0.0
    %102 = vmatprep.subr.mxu0 0.0
    %103 = vmatpush2.msra.mxu0 0.0
    %104 = vmatprep.subr.mxu0 0.0
    %105 = vmatpush2.msra.mxu0 0.0
    %106 = vmatprep.subr.mxu0 0.0
    %107 = vmatpush2.msra.mxu0 0.0
    %108 = vmatprep.subr.mxu0 0.0
    %109 = vmatpush2.msra.mxu0 0.0
    %110 = vmatprep.subr.mxu0 0.0
    %111 = vmatpush2.msra.mxu0 0.0
    %112 = vmatprep.subr.mxu0 0.0
    %113 = vmatpush2.msra.mxu0 0.0
    %114 = vmatprep.subr.mxu0 0.0
    %115 = vmatpush2.msra.mxu0 0.0
    %116 = vmatprep.subr.mxu0 0.0
    %117 = vmatpush2.msra.mxu0 0.0
    %118 = vmatprep.subr.mxu0 0.0
    %119 = vmatpush2.msra.mxu0 0.0
    %120 = vmatprep.subr.mxu0 0.0
    %121 = vmatpush2.msra.mxu0 0.0
    %122 = vmatprep.subr.mxu0 0.0
    %123 = vmatpush2.msra.mxu0 0.0
    %124 = vmatprep.subr.mxu0 0.0
    %125 = vmatpush2.msra.mxu0 0.0
    %126 = vmatprep.subr.mxu0 0.0
    %127 = vmatpush2.msra.mxu0 0.0
    %128 = vmatprep.mubr.f32.mxu0 0.0
    %129 = vmatmul.mubr.f32.gmra.mxu0 %v47
    %v130 = vpop.f32.mrf.mxu0
    %v131 = vadd.f32 0.0, %v130
    %v132 = vpop.f32.mrf.mxu0
    %133 = vdwg.mxu0
    %v134 = vadd.f32 %v46, %v131
    %135 = vst [vmem:[#allocation7] sm:$0xff] %v134
    // Predicated region
    $region26: #{tpu_custom_call.1} parent=1 // pred_check
      %p136 = pneg %p41
    $region27: #{tpu_custom_call.1} parent=1 // pred_check_branch
      %138 = sbr.rel (%p136) target = $region29
    $region28: #{tpu_custom_call.1} parent=1 // pred_region
      %v139 = vld [vmem:[#allocation7] sm:$0xff]
      %v140 = vld [vmem:[%s2] sm:$0x1]
      %v142 = vlaneseq
      %v143 = vshrl.u32 %v142, 7
      %v144 = vsub.s32 0, %v143
      %v145 = vrot.slane %v140, %v144
      %v147 = vadd.f32 %v139, %v145
      %vm148 = vcmp.ge.f32.partialorder %v147, 0.0
      %v149 = vmul.f32 %v147, 0.2
      %v150 = vsel %vm148, %v147, %v149
      %151 = vst [vmem:[#allocation7] sm:$0xff] %v150
    $region29: #{tpu_custom_call.1} parent=1 // pred_fallthru
      _
    // Predicated region
    $region30: #{tpu_custom_call.1} parent=1 // pred_check
      _
    $region31: #{tpu_custom_call.1} parent=1 // pred_check_branch
      %153 = sbr.rel (0) target = $region33
    $region32: #{tpu_custom_call.1} parent=1 // pred_region
      %s155 = ssub.s32 128, 128
      %156 = vsyncadd [#allocation4], %s155
      %s158 = sshll.u32 [#allocation7], 4
      %s159 = int_to_ptr.vmem [resolvable:$true] %s158
      %161 = dma.vmem_to_hbm [thread:$0]  %s159, 128, %s3, [#allocation4]
    $region33: #{tpu_custom_call.1} parent=1 // pred_fallthru
      _
    // Predicated region
    $region34: #{tpu_custom_call.1} parent=1 // pred_check
      _
    $region35: #{tpu_custom_call.1} parent=1 // pred_check_branch
      %163 = sbr.rel (0) target = $region37
    $region36: #{tpu_custom_call.1} parent=1 // pred_region
      %164 = dma.done [#allocation4], 128
    $region37: #{tpu_custom_call.1} parent=1 // pred_fallthru
      _
    %165 = vsyncpa [#allocation3], 1
    %166 = vsyncpa [#allocation6], 1
    %167 = vsyncpa [#allocation4], 1

</llo_original>
